<compile_context>
chip_gen: v5e
topology: v5e:2x2
jax: 0.10.0
libtpu: 0.0.40
codegen_flags: <defaults>
</compile_context>

<pallas_src>
import jax
import jax.numpy as jnp
from jax.experimental import pallas as pl
from jax.experimental.pallas import tpu as pltpu

_LANE = 128
_MAX_ROW_TILE = 4096  # (4096, 128) f32 block = 2 MiB per buffer.


def _pact_kernel(alpha_ref, x_ref, o_ref):
    # alpha_ref: (1, 1) f32 scalar in SMEM; x_ref / o_ref: VMEM tiles.
    alpha = alpha_ref[0, 0].astype(x_ref.dtype)  # keep store dtype-consistent
    x = x_ref[...]
    y = jnp.maximum(x, jnp.zeros((), dtype=x.dtype))
    o_ref[...] = jnp.minimum(y, alpha)


def pact_forward(x, alpha):
    """PACT forward: clamp(x, 0, alpha).

    x:     jnp array, any shape (here NCHW), float dtype.
    alpha: scalar float (the nn.Parameter value).
    """
    orig_shape = x.shape
    n_elems = x.size

    # Flatten to a lane-dense (rows, 128) slab. Only pad when the flat length
    # is not already a multiple of 128, so the aligned (common) case does no
    # extra HBM passes.
    x_flat = jnp.reshape(x, (-1,))
    rem = n_elems % _LANE
    if rem != 0:
        x_flat = jnp.pad(x_flat, (0, _LANE - rem))
    rows = x_flat.size // _LANE
    x2d = jnp.reshape(x_flat, (rows, _LANE))

    # Big blocks; a partial last block (rows % row_tile != 0) is handled by
    # Pallas with a masked writeback, clamp of the garbage read region is safe.
    if rows <= _MAX_ROW_TILE:
        row_tile = rows            # single block == full array extent
    else:
        row_tile = _MAX_ROW_TILE   # multiple of 8 -> (8,128)-tile friendly
    grid = (pl.cdiv(rows, row_tile),)

    alpha_arr = jnp.asarray(alpha, dtype=jnp.float32).reshape(1, 1)

    out2d = pl.pallas_call(
        _pact_kernel,
        out_shape=jax.ShapeDtypeStruct((rows, _LANE), x2d.dtype),
        grid_spec=pltpu.PrefetchScalarGridSpec(
            num_scalar_prefetch=0,
            grid=grid,
            in_specs=[
                pl.BlockSpec(memory_space=pltpu.SMEM),              # alpha (1,1)
                pl.BlockSpec((row_tile, _LANE), lambda i: (i, 0)),  # x tile
            ],
            out_specs=pl.BlockSpec((row_tile, _LANE), lambda i: (i, 0)),
        ),
        compiler_params=pltpu.CompilerParams(
            dimension_semantics=("parallel",)),  # shard rows across TCs (v7x)
    )(alpha_arr, x2d)

    if rem != 0:
        out_flat = jnp.reshape(out2d, (-1,))[:n_elems]
        return jnp.reshape(out_flat, orig_shape)
    return jnp.reshape(out2d, orig_shape)


class PACT:
    """JAX mirror of the PyTorch PACT module (forward only)."""

    def __init__(self, alpha=5.0):
        # nn.Parameter(torch.Tensor([alpha]), requires_grad=False)
        self.alpha = jnp.array([alpha], dtype=jnp.float32)

    def __call__(self, x):
        return pact_forward(x, self.alpha[0])


if __name__ == "__main__":
    key = jax.random.PRNGKey(0)
    module = PACT(alpha=5.0)

    # Main NCHW case: batch=2, channels=4, spatial=16x16 (lane-aligned path).
    x = jax.random.normal(key, (2, 4, 16, 16), dtype=jnp.float32) * 4.0
    y = jax.block_until_ready(module(x))
    y_ref = jnp.clip(x, 0.0, 5.0)
    assert y.shape == x.shape and y.dtype == x.dtype
    assert jnp.allclose(y, y_ref), "PACT kernel mismatch vs reference (aligned)"

    # Ragged case: flat size not a multiple of 128 exercises the pad path.
    x2 = jax.random.normal(jax.random.PRNGKey(1), (2, 3, 5, 7),
                           dtype=jnp.float32) * 4.0
    y2 = jax.block_until_ready(module(x2))
    assert jnp.allclose(y2, jnp.clip(x2, 0.0, 5.0)), "PACT kernel mismatch (ragged)"

    print("KERNEL_OK")
</pallas_src>

<mosaic_0001>
module attributes {stable_mosaic.version = 11 : i64} {
  func.func @_pact_kernel(%arg0: i32, %arg1: memref<1x1xf32, #tpu.memory_space<smem>>, %arg2: memref<16x128xf32, #tpu.memory_space<vmem>>, %arg3: memref<16x128xf32, #tpu.memory_space<vmem>>) attributes {dimension_semantics = [#tpu.dimension_semantics<parallel>], iteration_bounds = array<i64: 1>, scalar_prefetch = 0 : i64, scratch_operands = 0 : i64, tpu.core_type = #tpu.core_type<tc>, window_params = [{transform_indices = @transform_0, window_bounds = array<i64: 1, 1>}, {transform_indices = @transform_1, window_bounds = array<i64: 16, 128>}, {transform_indices = @transform_2, window_bounds = array<i64: 16, 128>}]} {
    %c0 = arith.constant 0 : index
    %c0_0 = arith.constant 0 : index
    %0 = memref.load %arg1[%c0, %c0_0] : memref<1x1xf32, #tpu.memory_space<smem>>
    %c0_1 = arith.constant 0 : index
    %c0_2 = arith.constant 0 : index
    %1 = vector.load %arg2[%c0_1, %c0_2] : memref<16x128xf32, #tpu.memory_space<vmem>>, vector<16x128xf32>
    %cst = arith.constant 0.000000e+00 : f32
    %2 = vector.broadcast %cst : f32 to vector<16x128xf32>
    %3 = arith.maximumf %1, %2 : vector<16x128xf32>
    %4 = vector.broadcast %0 : f32 to vector<16x128xf32>
    %5 = arith.minimumf %3, %4 : vector<16x128xf32>
    %c0_3 = arith.constant 0 : index
    %c0_4 = arith.constant 0 : index
    %6 = vector.load %arg3[%c0_3, %c0_4] : memref<16x128xf32, #tpu.memory_space<vmem>>, vector<16x128xf32>
    tpu.vector_store %arg3[%c0_3, %c0_4], %5 {strides = array<i32>} : memref<16x128xf32, #tpu.memory_space<vmem>>, vector<16x128xf32>,
    return
  }
  func.func @transform_0(%arg0: i32) -> (i32, i32) {
    %c0_i32 = arith.constant 0 : i32
    %c0_i32_0 = arith.constant 0 : i32
    %c0_i32_1 = arith.constant 0 : i32
    return %c0_i32, %c0_i32_0 : i32, i32
  }
  func.func @transform_1(%arg0: i32) -> (i32, i32) {
    %c0_i32 = arith.constant 0 : i32
    %c0_i32_0 = arith.constant 0 : i32
    return %arg0, %c0_i32 : i32, i32
  }
  func.func @transform_2(%arg0: i32) -> (i32, i32) {
    %c0_i32 = arith.constant 0 : i32
    %c0_i32_0 = arith.constant 0 : i32
    return %arg0, %c0_i32 : i32, i32
  }
}

</mosaic_0001>

<llo_original>
// kernel: tpu_custom_call.1
$region0: #{tpu_custom_call.1}
  #allocation0 [shape = 'u32[]', space=smem, size = 0x4, offset = 0x4, fixed_abs, tag = 'smem constant byte address 0x4 - core index']
  #allocation1 [shape = 'u32[72,128]{1,0:T(1,128)}', space=vmem, size = 0x9000, scoped, tag = 'internal scratch']
  #allocation2 [shape = 'f32[1,1]{1,0:T(1,128)S(6)}', space=smem, size = 0x200, scoped, tag = 'scoped memory for tpu_custom_call.1']
  %s0 = inlined_call_operand.<no memory space> [shape: f32[1,1], index: 0, kind: input, shape index: {}]
  %s1 = inlined_call_operand.hbm [shape: f32[16,128], index: 1, kind: input, shape index: {}]
  %s2 = inlined_call_operand.hbm [shape: f32[16,128], index: 2, kind: output, shape index: {}]
  %s3 = sld [smem:[#allocation0]]
  $region22: #{tpu_custom_call.1} parent=0
    _
  %s5 = ssub.s32 1, %s3
  %s6 = scalar_select 0, %s5, %s3
  %7 = sst [smem:[#allocation2]] %s0
  $region1: #{tpu_custom_call.1} parent=0
    #allocation3 [shape = 'u8[8192]{0}', space=vmem, size = 0x2000, scoped, tag = 'input window, operand 1, single buffered']
    #allocation4 [shape = 's32[1]{0}', space=sflag, size = 0x4, scoped, tag = 'scoped memory for tpu_custom_call.1']
    #allocation5 [shape = 's32[1]{0}', space=sflag, size = 0x4, scoped, tag = 'scoped memory for tpu_custom_call.1']
    #allocation6 [shape = 'u8[8192]{0}', space=vmem, size = 0x2000, scoped, tag = 'output window, operand 0, single buffered']
    %8 = vsyncpa [#allocation4], 0
    %9 = vsyncpa [#allocation5], 0
    // Predicated region
    $region2: #{tpu_custom_call.1} parent=1 // pred_check
      _
    $region3: #{tpu_custom_call.1} parent=1 // pred_check_branch
      %11 = sbr.rel (0) target = $region5
    $region4: #{tpu_custom_call.1} parent=1 // pred_region
      _
    $region5: #{tpu_custom_call.1} parent=1 // pred_fallthru
      _
    // Predicated region
    $region6: #{tpu_custom_call.1} parent=1 // pred_check
      _
    $region7: #{tpu_custom_call.1} parent=1 // pred_check_branch
      %13 = sbr.rel (0) target = $region9
    $region8: #{tpu_custom_call.1} parent=1 // pred_region
      %15 = vsyncadd [#allocation4], 0
      %s16 = sshll.u32 %s1, 4
      %s17 = int_to_ptr.hbm [resolvable:$true] %s16
      %s18 = sshll.u32 [#allocation3], 4
      %s19 = int_to_ptr.vmem [resolvable:$true] %s18
      %24 = dma.hbm_to_vmem [thread:$0]  %s17, 256, %s19, [#allocation4], 128, 128, 8
    $region9: #{tpu_custom_call.1} parent=1 // pred_fallthru
      _
    // Predicated region
    $region10: #{tpu_custom_call.1} parent=1 // pred_check
      _
    $region11: #{tpu_custom_call.1} parent=1 // pred_check_branch
      %26 = sbr.rel (0) target = $region13
    $region12: #{tpu_custom_call.1} parent=1 // pred_region
      %28 = dma.done [#allocation4], 256
    $region13: #{tpu_custom_call.1} parent=1 // pred_fallthru
      _
    %s29 = sld [smem:[#allocation2]]
    %v30 = vld [vmem:[#allocation3] sm:$0xff]
    %v31 = vld [vmem:[#allocation3 + $0x8] sm:$0xff]
    %v32 = vmax.f32 %v30, 0.0
    %v33 = vmax.f32 %v31, 0.0
    %v34 = vstv %s29
    %v35 = vmin.f32 %v32, %v34
    %v36 = vmin.f32 %v33, %v34
    %37 = vst [vmem:[#allocation6] sm:$0xff] %v35
    %38 = vst [vmem:[#allocation6 + $0x8] sm:$0xff] %v36
    // Predicated region
    $region14: #{tpu_custom_call.1} parent=1 // pred_check
      _
    $region15: #{tpu_custom_call.1} parent=1 // pred_check_branch
      %40 = sbr.rel (0) target = $region17
    $region16: #{tpu_custom_call.1} parent=1 // pred_region
      %42 = vsyncadd [#allocation5], 0
      %s43 = sshll.u32 [#allocation6], 4
      %s44 = int_to_ptr.vmem [resolvable:$true] %s43
      %s45 = sshll.u32 %s2, 4
      %s46 = int_to_ptr.hbm [resolvable:$true] %s45
      %51 = dma.vmem_to_hbm [thread:$0]  %s44, 256, %s46, [#allocation5], 128, 128, 8
    $region17: #{tpu_custom_call.1} parent=1 // pred_fallthru
      _
    // Predicated region
    $region18: #{tpu_custom_call.1} parent=1 // pred_check
      _
    $region19: #{tpu_custom_call.1} parent=1 // pred_check_branch
      %53 = sbr.rel (0) target = $region21
    $region20: #{tpu_custom_call.1} parent=1 // pred_region
      %55 = dma.done [#allocation5], 256
    $region21: #{tpu_custom_call.1} parent=1 // pred_fallthru
      _
    %56 = vsyncpa [#allocation4], 1
    %57 = vsyncpa [#allocation5], 1

</llo_original>
